<compile_context>
chip_gen: v6e
topology: v6e:2x2x1
jax: 0.10.0
libtpu: 0.0.40
codegen_flags: <defaults>
</compile_context>

<pallas_src>
import functools

import jax
import jax.numpy as jnp
from jax import lax
from jax.experimental import pallas as pl
from jax.experimental.pallas import tpu as pltpu

_LANE = 128                       # lane quantum
_SINGLE_BLOCK_BYTES = 256 * 1024  # below this a 1-step grid is fine
_MIN_GRID_STEPS = 4               # keep pipelining / megacore sharding alive


def _round_up(x, m):
    return (x + m - 1) // m * m


def _cdiv(a, b):
    return -(-a // b)


def _sublane_quantum(esize):
    # Sub-32-bit dtypes pack along sublanes: 8 rows (4B), 16 (2B), 32 (1B).
    return 8 * max(1, 4 // esize)


@functools.lru_cache(maxsize=None)
def _tpu_budgets():
    """(per-input block budget [f32-footprint bytes], vmem_limit_bytes)."""
    vmem_phys = 128 * 1024 * 1024
    try:
        vmem_phys = int(pltpu.get_tpu_info().vmem_capacity_bytes)
    except Exception:
        pass
    if vmem_phys <= 64 * 1024 * 1024:
        # v7x-class: 64 MiB VMEM/TC, 3.2 TB/s HBM -> larger-but-capped blocks.
        return 4 * 1024 * 1024, 48 * 1024 * 1024
    # v5e / v6e: 128 MiB physical VMEM -> 8 MiB blocks amortize per-step cost.
    return 8 * 1024 * 1024, 64 * 1024 * 1024


def _choose_tiles(rows, cols, esize, budget):
    """Pick (tile_r, tile_c). Budget is counted on the f32 footprint so the
    in-kernel f32 intermediates stay bounded regardless of input dtype."""
    cost = max(esize, 4)
    sub = _sublane_quantum(esize)
    rows_pad = _round_up(rows, sub)
    cols_pad = _round_up(cols, _LANE)
    slab = rows_pad * cols_pad * cost

    if slab <= min(_SINGLE_BLOCK_BYTES, budget):
        return rows, cols                      # genuinely tiny: one block

    # Force at least _MIN_GRID_STEPS blocks so double-buffering (and v7x
    # megacore sharding) stay active even when the slab fits the budget.
    budget = max(min(budget, _cdiv(slab, _MIN_GRID_STEPS)),
                 sub * _LANE * cost)

    # Column tile: as many 128-lane groups as fit the budget with >= sub rows.
    c_cap = max(_LANE, (budget // (sub * cost)) // _LANE * _LANE)
    tile_c = cols if cols_pad <= c_cap else c_cap
    tile_c_pad = _round_up(tile_c, _LANE)
    # Row tile: fill the remaining budget (multiple of sub, or the full dim).
    r_cap = max(sub, (budget // (tile_c_pad * cost)) // sub * sub)
    tile_r = rows if rows <= r_cap else r_cap
    return tile_r, tile_c


def _loss2_tile_kernel(t_ref, p_ref, o_ref, *, rows, cols, tile_r, tile_c,
                       mask_rows, mask_cols):
    """Accumulate sum(d*d + |d|) of one (tile_r, tile_c) block into the
    per-row-block (1,1) output accumulator (resident across the column axis)."""
    i = pl.program_id(0)
    j = pl.program_id(1)

    @pl.when(j == 0)
    def _init():
        o_ref[...] = jnp.zeros_like(o_ref)

    def tile_sum(masked):
        d = t_ref[...].astype(jnp.float32) - p_ref[...].astype(jnp.float32)
        e = d * d + jnp.abs(d)          # fused: sum(d^2) + sum(|d|) == sum(e)
        if masked:                       # only traced into the edge branch
            mask = None
            if mask_rows:
                rid = i * tile_r + lax.broadcasted_iota(
                    jnp.int32, (tile_r, 1), 0)
                mask = rid < rows
            if mask_cols:
                cid = j * tile_c + lax.broadcasted_iota(
                    jnp.int32, (1, tile_c), 1)
                cm = cid < cols
                mask = cm if mask is None else jnp.logical_and(mask, cm)
            e = jnp.where(mask, e, 0.0)
        # Two-level reduction: lane-direction reduce first, then a small sum.
        return jnp.sum(jnp.sum(e, axis=1, keepdims=True))

    if not (mask_rows or mask_cols):
        o_ref[...] += tile_sum(False)
    else:
        conds = []
        if mask_rows:
            conds.append(i == pl.num_programs(0) - 1)
        if mask_cols:
            conds.append(j == pl.num_programs(1) - 1)
        is_edge = functools.reduce(jnp.logical_or, conds)

        @pl.when(jnp.logical_not(is_edge))
        def _interior():                 # vast majority of tiles: no mask work
            o_ref[...] += tile_sum(False)

        @pl.when(is_edge)
        def _edge():                     # only ragged-edge tiles pay the mask
            o_ref[...] += tile_sum(True)


def _loss2_impl(truth, pred, block_budget_bytes, vmem_limit_bytes):
    assert truth.shape == pred.shape and truth.ndim == 5
    B, C, D, H, W = truth.shape
    rows = B * C
    cols = D * H * W

    # Contiguous reshape (bitcast under jit); no padding, no dtype change.
    t2 = truth.reshape(rows, cols)
    p2 = pred.reshape(rows, cols)

    esize = jnp.dtype(truth.dtype).itemsize
    tile_r, tile_c = _choose_tiles(rows, cols, esize, block_budget_bytes)
    n_row = pl.cdiv(rows, tile_r)
    n_col = pl.cdiv(cols, tile_c)
    mask_rows = n_row * tile_r > rows
    mask_cols = n_col * tile_c > cols

    kernel = functools.partial(
        _loss2_tile_kernel, rows=rows, cols=cols, tile_r=tile_r, tile_c=tile_c,
        mask_rows=mask_rows, mask_cols=mask_cols)

    partials = pl.pallas_call(
        kernel,
        out_shape=jax.ShapeDtypeStruct((n_row, 1), jnp.float32),
        grid_spec=pltpu.PrefetchScalarGridSpec(
            num_scalar_prefetch=0,
            grid=(n_row, n_col),
            in_specs=[
                pl.BlockSpec((tile_r, tile_c), lambda i, j: (i, j)),
                pl.BlockSpec((tile_r, tile_c), lambda i, j: (i, j)),
            ],
            # Output block constant over j -> VMEM-resident accumulator; one
            # writeback per row block instead of one per grid step.
            out_specs=pl.BlockSpec((1, 1), lambda i, j: (i, 0)),
        ),
        compiler_params=pltpu.CompilerParams(
            dimension_semantics=("parallel", "arbitrary"),
            vmem_limit_bytes=vmem_limit_bytes,
        ),
    )(t2, p2)

    # mean over (B,C) of per-(b,c) sums == total sum / (B*C)
    return jnp.sum(partials) / jnp.float32(rows)


_loss2_jit = jax.jit(_loss2_impl, static_argnums=(2, 3))


def loss2(truth, pred, *, block_budget_bytes=None, vmem_limit_bytes=None):
    """JAX/Pallas equivalent of Loss2.forward(truth, pred). Returns scalar f32."""
    auto_budget, auto_vmem = _tpu_budgets()
    if block_budget_bytes is None:
        block_budget_bytes = auto_budget
    if vmem_limit_bytes is None:
        vmem_limit_bytes = auto_vmem
    return _loss2_jit(truth, pred, block_budget_bytes, vmem_limit_bytes)


def _loss2_ref(truth, pred):
    d = truth.astype(jnp.float32) - pred.astype(jnp.float32)
    mse = jnp.sum(d * d, axis=(2, 3, 4))
    mae = jnp.sum(jnp.abs(d), axis=(2, 3, 4))
    return jnp.mean(mse) + jnp.mean(mae)


if __name__ == "__main__":
    key = jax.random.PRNGKey(0)
    k1, k2, k3, k4, k5, k6 = jax.random.split(key, 6)

    # Case 1: small aligned shape, f32 (tiny single-block fast path).
    shape = (2, 4, 4, 8, 8)                      # (B, C, D, H, W)
    truth = jax.random.normal(k1, shape, dtype=jnp.float32)
    pred = jax.random.normal(k2, shape, dtype=jnp.float32)
    out = jax.block_until_ready(loss2(truth, pred))
    ref = jax.block_until_ready(_loss2_ref(truth, pred))
    assert jnp.allclose(out, ref, rtol=1e-5, atol=1e-5), (out, ref)

    # Case 2: bf16 inputs -- streamed in bf16, cast to f32 inside the kernel.
    out_bf = jax.block_until_ready(loss2(truth.astype(jnp.bfloat16),
                                         pred.astype(jnp.bfloat16)))
    ref_bf = jax.block_until_ready(_loss2_ref(truth.astype(jnp.bfloat16),
                                              pred.astype(jnp.bfloat16)))
    assert jnp.allclose(out_bf, ref_bf, rtol=1e-4, atol=1e-4), (out_bf, ref_bf)

    # Case 3: ragged rows + cols with a tiny block budget to exercise the
    # multi-tile grid, the edge-only masking, and column-axis accumulation.
    shape3 = (2, 5, 3, 7, 11)                    # rows=10, cols=231
    t3 = jax.random.normal(k3, shape3, dtype=jnp.float32)
    p3 = jax.random.normal(k4, shape3, dtype=jnp.float32)
    out3 = jax.block_until_ready(loss2(t3, p3, block_budget_bytes=4096))
    ref3 = jax.block_until_ready(_loss2_ref(t3, p3))
    assert jnp.allclose(out3, ref3, rtol=1e-5, atol=1e-5), (out3, ref3)

    # Case 4: mid-size slab with the auto budget -- exercises the forced
    # multi-step grid (min-steps cap) and the unmasked interior fast path.
    shape4 = (2, 8, 8, 32, 32)                   # rows=16, cols=8192
    t4 = jax.random.normal(k5, shape4, dtype=jnp.float32)
    p4 = jax.random.normal(k6, shape4, dtype=jnp.float32)
    out4 = jax.block_until_ready(loss2(t4, p4))
    ref4 = jax.block_until_ready(_loss2_ref(t4, p4))
    assert jnp.allclose(out4, ref4, rtol=1e-4, atol=1e-2), (out4, ref4)

    print("KERNEL_OK")
</pallas_src>

<mosaic_0001>
module attributes {stable_mosaic.version = 11 : i64} {
  func.func @_loss2_tile_kernel(%arg0: i32, %arg1: i32, %arg2: memref<8x256xf32, #tpu.memory_space<vmem>>, %arg3: memref<8x256xf32, #tpu.memory_space<vmem>>, %arg4: memref<1x1xf32, #tpu.memory_space<vmem>>) attributes {dimension_semantics = [#tpu.dimension_semantics<parallel>, #tpu.dimension_semantics<arbitrary>], iteration_bounds = array<i64: 1, 1>, scalar_prefetch = 0 : i64, scratch_operands = 0 : i64, tpu.core_type = #tpu.core_type<tc>, window_params = [{transform_indices = @transform_0, window_bounds = array<i64: 8, 256>}, {transform_indices = @transform_1, window_bounds = array<i64: 8, 256>}, {transform_indices = @transform_2, window_bounds = array<i64: 1, 1>}]} {
    %c0_i32 = arith.constant 0 : i32
    %0 = arith.cmpi eq, %arg1, %c0_i32 : i32
    %1 = arith.extui %0 : i1 to i32
    %c0_i32_0 = arith.constant 0 : i32
    %2 = arith.cmpi ne, %1, %c0_i32_0 : i32
    scf.if %2 {
      %cst_9 = arith.constant 0.000000e+00 : f32
      %19 = vector.broadcast %cst_9 : f32 to vector<1x1xf32>
      %c0_10 = arith.constant 0 : index
      %c0_11 = arith.constant 0 : index
      %20 = vector.load %arg4[%c0_10, %c0_11] : memref<1x1xf32, #tpu.memory_space<vmem>>, vector<1x1xf32>
      tpu.vector_store %arg4[%c0_10, %c0_11], %19 {strides = array<i32>} : memref<1x1xf32, #tpu.memory_space<vmem>>, vector<1x1xf32>,
    } else {
    }
    %c0 = arith.constant 0 : index
    %c0_1 = arith.constant 0 : index
    %3 = vector.load %arg4[%c0, %c0_1] : memref<1x1xf32, #tpu.memory_space<vmem>>, vector<1x1xf32>
    %c0_2 = arith.constant 0 : index
    %c0_3 = arith.constant 0 : index
    %4 = vector.load %arg2[%c0_2, %c0_3] : memref<8x256xf32, #tpu.memory_space<vmem>>, vector<8x256xf32>
    %c0_4 = arith.constant 0 : index
    %c0_5 = arith.constant 0 : index
    %5 = vector.load %arg3[%c0_4, %c0_5] : memref<8x256xf32, #tpu.memory_space<vmem>>, vector<8x256xf32>
    %6 = arith.subf %4, %5 : vector<8x256xf32>
    %7 = arith.mulf %6, %6 : vector<8x256xf32>
    %8 = math.absf %6 : vector<8x256xf32>
    %9 = arith.addf %7, %8 : vector<8x256xf32>
    %cst = arith.constant dense<0.000000e+00> : vector<8xf32>
    %10 = vector.multi_reduction <add>, %9, %cst [1] : vector<8x256xf32> to vector<8xf32>
    %11 = vector.shape_cast %10 : vector<8xf32> to vector<8x1xf32>
    %12 = vector.shape_cast %11 : vector<8x1xf32> to vector<1x8x1xf32>
    %cst_6 = arith.constant dense<0.000000e+00> : vector<1xf32>
    %13 = vector.multi_reduction <add>, %12, %cst_6 [1, 2] : vector<1x8x1xf32> to vector<1xf32>
    %14 = vector.shape_cast %13 : vector<1xf32> to vector<1x1x1xf32>
    %15 = vector.extract %14[0, 0, 0] : f32 from vector<1x1x1xf32>
    %16 = vector.broadcast %15 : f32 to vector<1x1xf32>
    %17 = arith.addf %3, %16 : vector<1x1xf32>
    %c0_7 = arith.constant 0 : index
    %c0_8 = arith.constant 0 : index
    %18 = vector.load %arg4[%c0_7, %c0_8] : memref<1x1xf32, #tpu.memory_space<vmem>>, vector<1x1xf32>
    tpu.vector_store %arg4[%c0_7, %c0_8], %17 {strides = array<i32>} : memref<1x1xf32, #tpu.memory_space<vmem>>, vector<1x1xf32>,
    return
  }
  func.func @transform_0(%arg0: i32, %arg1: i32) -> (i32, i32) {
    %c0_i32 = arith.constant 0 : i32
    return %arg0, %arg1 : i32, i32
  }
  func.func @transform_1(%arg0: i32, %arg1: i32) -> (i32, i32) {
    %c0_i32 = arith.constant 0 : i32
    return %arg0, %arg1 : i32, i32
  }
  func.func @transform_2(%arg0: i32, %arg1: i32) -> (i32, i32) {
    %c0_i32 = arith.constant 0 : i32
    %c0_i32_0 = arith.constant 0 : i32
    return %arg0, %c0_i32 : i32, i32
  }
}

</mosaic_0001>

<llo_original>
// kernel: _loss2_impl.1
$region0: #{_loss2_impl.1}
  #allocation0 [shape = 'u32[]', space=smem, size = 0x4, offset = 0x4, fixed_abs, tag = 'smem constant byte address 0x4 - core index']
  #allocation1 [shape = 'u32[144,128]{1,0:T(1,128)}', space=vmem, size = 0x12000, scoped, tag = 'internal scratch']
  %s0 = inlined_call_operand.vmem [shape: f32[8,256], index: 0, kind: input, shape index: {}]
  %s1 = inlined_call_operand.vmem [shape: f32[8,256], index: 1, kind: input, shape index: {}]
  %s2 = inlined_call_operand.hbm [shape: f32[1,1], index: 2, kind: output, shape index: {}]
  %s3 = sld [smem:[#allocation0]]
  $region22: #{_loss2_impl.1} parent=0
    _
  %s5 = ssub.s32 1, %s3
  %s6 = scalar_select 0, %s5, %s3
  $region1: #{_loss2_impl.1} parent=0
    #allocation2 [shape = 'u8[512]{0}', space=vmem, size = 0x400, scoped, tag = 'output window, operand 0, single buffered']
    #allocation3 [shape = 's32[1]{0}', space=sflag, size = 0x4, scoped, tag = 'scoped memory for _loss2_impl.1']
    %7 = vsyncpa [#allocation3], 0
    // Predicated region
    $region2: #{_loss2_impl.1} parent=1 // pred_check
      _
    $region3: #{_loss2_impl.1} parent=1 // pred_check_branch
      %9 = sbr.rel (0) target = $region5
    $region4: #{_loss2_impl.1} parent=1 // pred_region
      _
    $region5: #{_loss2_impl.1} parent=1 // pred_fallthru
      _
    // Predicated region
    $region6: #{_loss2_impl.1} parent=1 // pred_check
      _
    $region7: #{_loss2_impl.1} parent=1 // pred_check_branch
      %11 = sbr.rel (0) target = $region9
    $region8: #{_loss2_impl.1} parent=1 // pred_region
      _
    $region9: #{_loss2_impl.1} parent=1 // pred_fallthru
      _
    %p12 = scmp.eq.s32.totalorder 0, 0
    // Predicated region
    $region10: #{_loss2_impl.1} parent=1 // pred_check
      %p13 = pneg %p12
    $region11: #{_loss2_impl.1} parent=1 // pred_check_branch
      %15 = sbr.rel (%p13) target = $region13
    $region12: #{_loss2_impl.1} parent=1 // pred_region
      %vm16 = vcmask 0
      %17 = vst.msk [vmem:[#allocation2] sm:$0x1] %vm16, 0.0
    $region13: #{_loss2_impl.1} parent=1 // pred_fallthru
      _
    %v18 = vld [vmem:[#allocation2] sm:$0x1]
    %v19 = vld [vmem:[%s0] sm:$0xff]
    %v20 = vld [vmem:[%s0 + $0x8] sm:$0xff]
    %v21 = vld [vmem:[%s1] sm:$0xff]
    %v22 = vld [vmem:[%s1 + $0x8] sm:$0xff]
    %v23 = vsub.f32 %v19, %v21
    %v24 = vsub.f32 %v20, %v22
    %v25 = vmul.f32 %v23, %v23
    %v26 = vmul.f32 %v24, %v24
    %v27 = vand.u32 2147483647, %v23
    %v28 = vand.u32 2147483647, %v24
    %v29 = vadd.f32 %v25, %v27
    %v30 = vadd.f32 %v26, %v28
    %v31 = vadd.f32 %v29, %v30
    %32 = vadd.xlane.f32.xlu0 %v31
    %v33 = vpop.xlane.xlu0 %32
    %vm34 = vcmask 7168
    %v35 = vsel %vm34, %v33, 0.0
    %36 = vadd.xlane.f32.xlu0 %v35
    %v37 = vpop.xlane.xlu0 %36
    %v38 = vrot.slane %v37, 4
    %v39 = vadd.f32 %v37, %v38
    %v40 = vrot.slane %v39, 2
    %v41 = vadd.f32 %v39, %v40
    %v42 = vrot.slane %v41, 1
    %v43 = vadd.f32 %v41, %v42
    %s44 = vtos %v43
    %v45 = vstv %s44
    %v46 = vadd.f32 %v18, %v45
    %vm47 = vcmask 0
    %48 = vst.msk [vmem:[#allocation2] sm:$0x1] %vm47, %v46
    // Predicated region
    $region14: #{_loss2_impl.1} parent=1 // pred_check
      _
    $region15: #{_loss2_impl.1} parent=1 // pred_check_branch
      %50 = sbr.rel (0) target = $region17
    $region16: #{_loss2_impl.1} parent=1 // pred_region
      %s52 = ssub.s32 16, 16
      %53 = vsyncadd [#allocation3], %s52
      %s55 = sshll.u32 [#allocation2], 4
      %s56 = int_to_ptr.vmem [resolvable:$true] %s55
      %58 = dma.vmem_to_hbm [thread:$0]  %s56, 16, %s2, [#allocation3]
    $region17: #{_loss2_impl.1} parent=1 // pred_fallthru
      _
    // Predicated region
    $region18: #{_loss2_impl.1} parent=1 // pred_check
      _
    $region19: #{_loss2_impl.1} parent=1 // pred_check_branch
      %60 = sbr.rel (0) target = $region21
    $region20: #{_loss2_impl.1} parent=1 // pred_region
      %61 = dma.done [#allocation3], 16
    $region21: #{_loss2_impl.1} parent=1 // pred_fallthru
      _
    %62 = vsyncpa [#allocation3], 1

</llo_original>
